<compile_context>
chip_gen: v5e
topology: v5e:2x2
jax: 0.10.0
libtpu: 0.0.40
codegen_flags: <defaults>
</compile_context>

<pallas_src>
import functools

import numpy as np
import jax
import jax.numpy as jnp
from jax.experimental import pallas as pl
from jax.experimental.pallas import tpu as pltpu

TWO_PI = 2.0 * np.pi


def _tensor_basis(coords, m, sign):
    """coords: (D, TN) f32, N on lanes.

    Returns (re, im), each (m**D, TN) f32, of exp(sign * 2j*pi * k . coords)
    for the integer mode grid k in {0..m-1}^D (last spatial dim fastest),
    built as a separable tensor product so only 2*(m-1)*D*TN transcendentals
    are evaluated.  The DFT sign is folded into the combine (no sign multiply).
    """
    d_dims, tn = coords.shape
    re = jnp.ones((1, tn), jnp.float32)
    im = jnp.zeros((1, tn), jnp.float32)
    # Process dims last->first so the last spatial dim is the fastest mode
    # index (matches meshgrid(..., indexing="ij").ravel() weight ordering).
    for d in reversed(range(d_dims)):
        xd = coords[d:d + 1, :]                    # (1, TN)
        parts_re, parts_im = [re], [im]            # k_d = 0 factor is exactly 1
        for b in range(1, m):
            ph = (TWO_PI * b) * xd                 # (1, TN) f32 phase
            cb = jnp.cos(ph)
            sb = jnp.sin(ph)
            if sign >= 0:                          # factor = cb + i*sb
                parts_re.append(re * cb - im * sb)
                parts_im.append(im * cb + re * sb)
            else:                                  # factor = cb - i*sb
                parts_re.append(re * cb + im * sb)
                parts_im.append(im * cb - re * sb)
        re = jnp.concatenate(parts_re, axis=0)
        im = jnp.concatenate(parts_im, axis=0)
    return re, im


def _stage1_kernel(h_ref, xt_ref, re_ref, im_ref, *, m):
    """Forward truncated DFT: accumulate sum_x e^{-2*pi*i k.x} h(x) over N tiles.

    Grid = (n_splits 'parallel', B 'parallel', nt_split 'arbitrary'); the
    re/im output blocks are resident across the reduction axis (accumulators).
    """
    t = pl.program_id(2)

    @pl.when(t == 0)
    def _init():
        re_ref[...] = jnp.zeros_like(re_ref)
        im_ref[...] = jnp.zeros_like(im_ref)

    h = h_ref[0]                                    # (TN, cin) f32
    xt = xt_ref[0]                                  # (D, TN)   f32

    basis_re, basis_im = _tensor_basis(xt, m, sign=-1.0)        # (K, TN) each

    # Two f32 MXU dots -- no (2K, TN) concat, no bf16 cast transients.
    re_ref[0, 0] += jnp.dot(basis_re, h, preferred_element_type=jnp.float32)
    im_ref[0, 0] += jnp.dot(basis_im, h, preferred_element_type=jnp.float32)


def _stage2_kernel(gre_ref, gim_ref, yt_ref, o_ref, *, m):
    """Inverse truncated DFT at output coords y; lane-dense (cout, TN) stores."""
    gre = gre_ref[0]                                # (cout, K) f32
    gim = gim_ref[0]                                # (cout, K) f32
    yt = yt_ref[0]                                  # (D, TN)   f32
    basis_re, basis_im = _tensor_basis(yt, m, sign=1.0)         # cos, sin
    out = (jnp.dot(gre, basis_re, preferred_element_type=jnp.float32)
           - jnp.dot(gim, basis_im, preferred_element_type=jnp.float32))
    o_ref[0] = out.astype(o_ref.dtype)              # (cout, TN)


def _vmem_budget():
    """(vmem_limit_bytes, per-step working-set budget) from the actual chip."""
    try:
        cap = int(pltpu.get_tpu_info().vmem_capacity_bytes)
    except Exception:
        cap = 128 * 1024 * 1024
    limit = min(int(0.85 * cap), 110 * 1024 * 1024)  # ~110 MiB v5e/v6e, ~54 MiB v7x
    return limit, int(0.70 * limit)


def _pick_tile_n(n, k_modes, budget_bytes, target_cap=2048):
    """Largest multiple of 128 dividing n whose per-step working set fits budget.

    Per unit of TN (all f32):
      h tile   (2 buffers, cin lane-padded to 128)     : 2*128*4 B
      coords   (2 buffers, D sublane-padded to 8)      : 2*8*4 B
      out tile (stage 2, 2 buffers, cout padded to 8)  : 2*8*4 B
      basis re+im + tensor-product transients          : ~3*K*4 B
    """
    per_tn = (2 * 128 + 2 * 8 + 2 * 8) * 4 + 3 * k_modes * 4
    cap = (budget_bytes // per_tn) // 128 * 128
    cap = max(128, min(cap, target_cap))
    best = None
    t = 128
    while t <= min(n, cap):
        if n % t == 0:
            best = t
        t += 128
    return best if best is not None else n


def _single_buffered_spec(shape, index_map):
    """Constant-index input: single-buffer it if this JAX supports pipeline_mode."""
    buffered = getattr(pl, "Buffered", None)
    if buffered is not None:
        try:
            return pl.BlockSpec(shape, index_map, pipeline_mode=buffered(1))
        except TypeError:
            pass
    return pl.BlockSpec(shape, index_map)


def spectral_conv(h, x, y, w_re, w_im, *, modes_per_dim, tile_n=None,
                  n_reduce_splits=None):
    """h: (B,nx,ny,nz,Cin), x/y: (B,nx,ny,nz,D), w_*: (K,Cin,Cout)
    -> (B,nx,ny,nz,Cout)."""
    B, nx, ny, nz, cin = h.shape
    D = x.shape[-1]
    K, cin2, cout = w_re.shape
    m = int(modes_per_dim)
    assert cin2 == cin and K == m ** D, "weights must cover the {0..m-1}^D mode grid"
    N = nx * ny * nz

    vmem_limit, budget = _vmem_budget()
    if tile_n is None:
        tile_n = _pick_tile_n(N, K, budget)
    if N % tile_n != 0 or not (tile_n % 128 == 0 or tile_n == N):
        raise ValueError(f"tile_n={tile_n} must divide N={N} and be a multiple "
                         f"of 128 (or equal N)")
    nt = N // tile_n

    # Split the N reduction across a leading 'parallel' axis when only one
    # batch element exists so v7x's second TensorCore has work (the partial
    # accumulators are summed in the wrapper); harmless on v5e/v6e (1 TC).
    if n_reduce_splits is None:
        n_splits = 2 if (B == 1 and nt % 2 == 0) else 1
    else:
        n_splits = int(n_reduce_splits)
    if nt % n_splits != 0:
        raise ValueError(f"n_reduce_splits={n_splits} must divide nt={nt}")
    nt_split = nt // n_splits

    # Layout plumbing: channels-last h, coords transposed so N sits on lanes.
    hf = h.reshape(B, N, cin).astype(jnp.float32)                      # (B, N, cin)
    xt = jnp.swapaxes(x.reshape(B, N, D).astype(jnp.float32), 1, 2)    # (B, D, N)
    yt = jnp.swapaxes(y.reshape(B, N, D).astype(jnp.float32), 1, 2)    # (B, D, N)

    cparams = dict(vmem_limit_bytes=vmem_limit)

    # ---- stage 1: streamed forward DFT (raw re/im moments; N = reduction) ----
    acc_re, acc_im = pl.pallas_call(
        functools.partial(_stage1_kernel, m=m),
        out_shape=(jax.ShapeDtypeStruct((n_splits, B, K, cin), jnp.float32),
                   jax.ShapeDtypeStruct((n_splits, B, K, cin), jnp.float32)),
        grid_spec=pltpu.PrefetchScalarGridSpec(
            num_scalar_prefetch=0,
            grid=(n_splits, B, nt_split),
            in_specs=[
                pl.BlockSpec((1, tile_n, cin),
                             lambda p, b, t, _s=nt_split: (b, p * _s + t, 0)),
                pl.BlockSpec((1, D, tile_n),
                             lambda p, b, t, _s=nt_split: (b, 0, p * _s + t)),
            ],
            out_specs=[
                pl.BlockSpec((1, 1, K, cin), lambda p, b, t: (p, b, 0, 0)),
                pl.BlockSpec((1, 1, K, cin), lambda p, b, t: (p, b, 0, 0)),
            ],
        ),
        compiler_params=pltpu.CompilerParams(
            dimension_semantics=("parallel", "parallel", "arbitrary"), **cparams),
    )(hf, xt)

    # ---- per-mode complex channel mix: plain XLA einsums in the wrapper ----
    # (K tiny (1,cin)x(cin,cout) matmuls have ~zero MXU utilization inside the
    #  kernel and would pin a double-buffered packed weight in VMEM.)
    inv_n = jnp.float32(1.0 / N)
    hk_re = (acc_re.sum(axis=0) if n_splits > 1 else acc_re[0]) * inv_n   # (B,K,cin)
    hk_im = (acc_im.sum(axis=0) if n_splits > 1 else acc_im[0]) * inv_n
    wr = w_re.astype(jnp.float32)
    wi = w_im.astype(jnp.float32)
    # Gk = Hk @ W_k (complex); emit lane-dense (B, cout, K) for stage 2.
    gk_re = (jnp.einsum('bkc,kco->bok', hk_re, wr)
             - jnp.einsum('bkc,kco->bok', hk_im, wi))
    gk_im = (jnp.einsum('bkc,kco->bok', hk_re, wi)
             + jnp.einsum('bkc,kco->bok', hk_im, wr))

    # ---- stage 2: inverse truncated DFT at y (N fully parallel) ----
    out_t = pl.pallas_call(
        functools.partial(_stage2_kernel, m=m),
        out_shape=jax.ShapeDtypeStruct((B, cout, N), jnp.float32),
        grid_spec=pltpu.PrefetchScalarGridSpec(
            num_scalar_prefetch=0,
            grid=(B, nt),
            in_specs=[
                _single_buffered_spec((1, cout, K), lambda b, t: (b, 0, 0)),
                _single_buffered_spec((1, cout, K), lambda b, t: (b, 0, 0)),
                pl.BlockSpec((1, D, tile_n), lambda b, t: (b, 0, t)),
            ],
            out_specs=pl.BlockSpec((1, cout, tile_n), lambda b, t: (b, 0, t)),
        ),
        compiler_params=pltpu.CompilerParams(
            dimension_semantics=("parallel", "parallel"), **cparams),
    )(gk_re, gk_im, yt)

    # Layout plumbing back to channels-last (a fused consumer could absorb it).
    return jnp.transpose(out_t, (0, 2, 1)).reshape(B, nx, ny, nz, cout)


def spectral_conv_ref(h, x, y, freqs, w_re, w_im):
    """Pure-JAX reference (same math, complex arithmetic, f32/complex64)."""
    B, nx, ny, nz, cin = h.shape
    N = nx * ny * nz
    hf = h.reshape(B, N, cin).astype(jnp.complex64)
    xf = x.reshape(B, N, -1).astype(jnp.float32)
    yf = y.reshape(B, N, -1).astype(jnp.float32)
    W = w_re.astype(jnp.complex64) + 1j * w_im.astype(jnp.complex64)
    basis_x = jnp.exp(-1j * TWO_PI * jnp.einsum('bnd,kd->bnk', xf, freqs)).astype(jnp.complex64)
    Hk = jnp.einsum('bnk,bnc->bkc', basis_x, hf) / N
    Gk = jnp.einsum('bki,kio->bko', Hk, W)
    basis_y = jnp.exp(1j * TWO_PI * jnp.einsum('bnd,kd->bnk', yf, freqs)).astype(jnp.complex64)
    g = jnp.real(jnp.einsum('bnk,bko->bno', basis_y, Gk))
    return g.reshape(B, nx, ny, nz, -1).astype(jnp.float32)


if __name__ == "__main__":
    # small shapes consistent with the module
    B, nx, ny, nz = 2, 8, 8, 8
    n_spatial_dims = 3
    n_channels_in, n_channels_out = 4, 4
    modes_per_dim = 2                       # kept integer frequencies per spatial dim

    key = jax.random.PRNGKey(0)
    k_h, k_x, k_y, k_wr, k_wi = jax.random.split(key, 5)

    h = jax.random.normal(k_h, (B, nx, ny, nz, n_channels_in), dtype=jnp.float32)
    # coordinate grids in [0, 1) plus a little jitter so x != y
    gx, gy, gz = jnp.meshgrid(jnp.arange(nx) / nx, jnp.arange(ny) / ny,
                              jnp.arange(nz) / nz, indexing="ij")
    coords = jnp.stack([gx, gy, gz], axis=-1)[None].astype(jnp.float32)
    coords = jnp.broadcast_to(coords, (B, nx, ny, nz, n_spatial_dims))
    x = coords + 0.01 * jax.random.normal(k_x, coords.shape, dtype=jnp.float32)
    y = coords + 0.01 * jax.random.normal(k_y, coords.shape, dtype=jnp.float32)

    # truncated mode set: all integer combos in {0,..,m-1}^3 (last dim fastest)
    m_vals = jnp.arange(modes_per_dim, dtype=jnp.float32)
    fx, fy, fz = jnp.meshgrid(m_vals, m_vals, m_vals, indexing="ij")
    freqs = jnp.stack([fx.ravel(), fy.ravel(), fz.ravel()], axis=-1)   # (K, 3)
    K = freqs.shape[0]

    # deterministic per-mode complex weights (FNO-style 1/(Cin*Cout) scale)
    w_scale = 1.0 / (n_channels_in * n_channels_out)
    w_re = w_scale * jax.random.normal(k_wr, (K, n_channels_in, n_channels_out), dtype=jnp.float32)
    w_im = w_scale * jax.random.normal(k_wi, (K, n_channels_in, n_channels_out), dtype=jnp.float32)

    # B=2, tile_n=256 -> two N-tiles per batch, exercising the reduction axis.
    g = spectral_conv(h, x, y, w_re, w_im, modes_per_dim=modes_per_dim, tile_n=256)
    g = jax.block_until_ready(g)
    g_ref = jax.block_until_ready(spectral_conv_ref(h, x, y, freqs, w_re, w_im))
    assert g.shape == (B, nx, ny, nz, n_channels_out)
    assert np.allclose(np.asarray(g), np.asarray(g_ref), rtol=5e-2, atol=2e-3), (
        "kernel disagrees with reference (B=2)")

    # B=1, tile_n=128 -> four N-tiles, exercising the split-reduction path
    # (partial accumulators across the leading 'parallel' axis).
    g1 = spectral_conv(h[:1], x[:1], y[:1], w_re, w_im,
                       modes_per_dim=modes_per_dim, tile_n=128)
    g1 = jax.block_until_ready(g1)
    g1_ref = jax.block_until_ready(
        spectral_conv_ref(h[:1], x[:1], y[:1], freqs, w_re, w_im))
    assert np.allclose(np.asarray(g1), np.asarray(g1_ref), rtol=5e-2, atol=2e-3), (
        "kernel disagrees with reference (B=1, split reduction)")

    print("KERNEL_OK")
</pallas_src>

<mosaic_0001>
module attributes {stable_mosaic.version = 11 : i64} {
  func.func @_stage1_kernel(%arg0: i32, %arg1: i32, %arg2: i32, %arg3: memref<1x256x4xf32, #tpu.memory_space<vmem>>, %arg4: memref<1x3x256xf32, #tpu.memory_space<vmem>>, %arg5: memref<1x1x8x4xf32, #tpu.memory_space<vmem>>, %arg6: memref<1x1x8x4xf32, #tpu.memory_space<vmem>>) attributes {dimension_semantics = [#tpu.dimension_semantics<parallel>, #tpu.dimension_semantics<parallel>, #tpu.dimension_semantics<arbitrary>], iteration_bounds = array<i64: 1, 2, 2>, scalar_prefetch = 0 : i64, scratch_operands = 0 : i64, tpu.core_type = #tpu.core_type<tc>, window_params = [{transform_indices = @transform_0, window_bounds = array<i64: 1, 256, 4>}, {transform_indices = @transform_1, window_bounds = array<i64: 1, 3, 256>}, {transform_indices = @transform_2, window_bounds = array<i64: 1, 1, 8, 4>}, {transform_indices = @transform_3, window_bounds = array<i64: 1, 1, 8, 4>}]} {
    %c0_i32 = arith.constant 0 : i32
    %0 = arith.cmpi eq, %arg2, %c0_i32 : i32
    %1 = arith.extui %0 : i1 to i32
    %c0_i32_0 = arith.constant 0 : i32
    %2 = arith.cmpi ne, %1, %c0_i32_0 : i32
    scf.if %2 {
      %cst_28 = arith.constant 0.000000e+00 : f32
      %70 = vector.broadcast %cst_28 : f32 to vector<1x1x8x4xf32>
      %c0_29 = arith.constant 0 : index
      %c0_30 = arith.constant 0 : index
      %c0_31 = arith.constant 0 : index
      %c0_32 = arith.constant 0 : index
      %71 = vector.load %arg5[%c0_29, %c0_30, %c0_31, %c0_32] : memref<1x1x8x4xf32, #tpu.memory_space<vmem>>, vector<1x1x8x4xf32>
      tpu.vector_store %arg5[%c0_29, %c0_30, %c0_31, %c0_32], %70 {strides = array<i32>} : memref<1x1x8x4xf32, #tpu.memory_space<vmem>>, vector<1x1x8x4xf32>,
      %cst_33 = arith.constant 0.000000e+00 : f32
      %72 = vector.broadcast %cst_33 : f32 to vector<1x1x8x4xf32>
      %c0_34 = arith.constant 0 : index
      %c0_35 = arith.constant 0 : index
      %c0_36 = arith.constant 0 : index
      %c0_37 = arith.constant 0 : index
      %73 = vector.load %arg6[%c0_34, %c0_35, %c0_36, %c0_37] : memref<1x1x8x4xf32, #tpu.memory_space<vmem>>, vector<1x1x8x4xf32>
      tpu.vector_store %arg6[%c0_34, %c0_35, %c0_36, %c0_37], %72 {strides = array<i32>} : memref<1x1x8x4xf32, #tpu.memory_space<vmem>>, vector<1x1x8x4xf32>,
    } else {
    }
    %c0 = arith.constant 0 : index
    %c0_1 = arith.constant 0 : index
    %c0_2 = arith.constant 0 : index
    %3 = vector.load %arg3[%c0, %c0_1, %c0_2] : memref<1x256x4xf32, #tpu.memory_space<vmem>>, vector<1x256x4xf32>
    %4 = vector.shape_cast %3 : vector<1x256x4xf32> to vector<256x4xf32>
    %c0_3 = arith.constant 0 : index
    %c0_4 = arith.constant 0 : index
    %c0_5 = arith.constant 0 : index
    %5 = vector.load %arg4[%c0_3, %c0_4, %c0_5] : memref<1x3x256xf32, #tpu.memory_space<vmem>>, vector<1x3x256xf32>
    %6 = vector.shape_cast %5 : vector<1x3x256xf32> to vector<3x256xf32>
    %cst = arith.constant 1.000000e+00 : f32
    %7 = vector.broadcast %cst : f32 to vector<1x256xf32>
    %cst_6 = arith.constant 0.000000e+00 : f32
    %8 = vector.broadcast %cst_6 : f32 to vector<1x256xf32>
    %9 = vector.extract_strided_slice %6 {offsets = [2, 0], sizes = [1, 256], strides = [1, 1]} : vector<3x256xf32> to vector<1x256xf32>
    %cst_7 = arith.constant 6.28318548 : f32
    %10 = vector.broadcast %cst_7 : f32 to vector<1x256xf32>
    %11 = arith.mulf %10, %9 : vector<1x256xf32>
    %12 = math.cos %11 : vector<1x256xf32>
    %13 = math.sin %11 : vector<1x256xf32>
    %14 = arith.mulf %7, %12 : vector<1x256xf32>
    %15 = arith.mulf %8, %13 : vector<1x256xf32>
    %16 = arith.addf %14, %15 : vector<1x256xf32>
    %17 = arith.mulf %8, %12 : vector<1x256xf32>
    %18 = arith.mulf %7, %13 : vector<1x256xf32>
    %19 = arith.subf %17, %18 : vector<1x256xf32>
    %20 = tpu.concatenate %7, %16 in 0 : vector<1x256xf32>, vector<1x256xf32> -> vector<2x256xf32>
    %21 = tpu.concatenate %8, %19 in 0 : vector<1x256xf32>, vector<1x256xf32> -> vector<2x256xf32>
    %22 = vector.extract_strided_slice %6 {offsets = [1, 0], sizes = [1, 256], strides = [1, 1]} : vector<3x256xf32> to vector<1x256xf32>
    %cst_8 = arith.constant 6.28318548 : f32
    %23 = vector.broadcast %cst_8 : f32 to vector<1x256xf32>
    %24 = arith.mulf %23, %22 : vector<1x256xf32>
    %25 = math.cos %24 : vector<1x256xf32>
    %26 = math.sin %24 : vector<1x256xf32>
    %27 = vector.broadcast %25 : vector<1x256xf32> to vector<2x256xf32>
    %28 = arith.mulf %20, %27 : vector<2x256xf32>
    %29 = vector.broadcast %26 : vector<1x256xf32> to vector<2x256xf32>
    %30 = arith.mulf %21, %29 : vector<2x256xf32>
    %31 = arith.addf %28, %30 : vector<2x256xf32>
    %32 = vector.broadcast %25 : vector<1x256xf32> to vector<2x256xf32>
    %33 = arith.mulf %21, %32 : vector<2x256xf32>
    %34 = vector.broadcast %26 : vector<1x256xf32> to vector<2x256xf32>
    %35 = arith.mulf %20, %34 : vector<2x256xf32>
    %36 = arith.subf %33, %35 : vector<2x256xf32>
    %37 = tpu.concatenate %20, %31 in 0 : vector<2x256xf32>, vector<2x256xf32> -> vector<4x256xf32>
    %38 = tpu.concatenate %21, %36 in 0 : vector<2x256xf32>, vector<2x256xf32> -> vector<4x256xf32>
    %39 = vector.extract_strided_slice %6 {offsets = [0, 0], sizes = [1, 256], strides = [1, 1]} : vector<3x256xf32> to vector<1x256xf32>
    %cst_9 = arith.constant 6.28318548 : f32
    %40 = vector.broadcast %cst_9 : f32 to vector<1x256xf32>
    %41 = arith.mulf %40, %39 : vector<1x256xf32>
    %42 = math.cos %41 : vector<1x256xf32>
    %43 = math.sin %41 : vector<1x256xf32>
    %44 = vector.broadcast %42 : vector<1x256xf32> to vector<4x256xf32>
    %45 = arith.mulf %37, %44 : vector<4x256xf32>
    %46 = vector.broadcast %43 : vector<1x256xf32> to vector<4x256xf32>
    %47 = arith.mulf %38, %46 : vector<4x256xf32>
    %48 = arith.addf %45, %47 : vector<4x256xf32>
    %49 = vector.broadcast %42 : vector<1x256xf32> to vector<4x256xf32>
    %50 = arith.mulf %38, %49 : vector<4x256xf32>
    %51 = vector.broadcast %43 : vector<1x256xf32> to vector<4x256xf32>
    %52 = arith.mulf %37, %51 : vector<4x256xf32>
    %53 = arith.subf %50, %52 : vector<4x256xf32>
    %54 = tpu.concatenate %37, %48 in 0 : vector<4x256xf32>, vector<4x256xf32> -> vector<8x256xf32>
    %55 = tpu.concatenate %38, %53 in 0 : vector<4x256xf32>, vector<4x256xf32> -> vector<8x256xf32>
    %c0_10 = arith.constant 0 : index
    %c0_11 = arith.constant 0 : index
    %c0_12 = arith.constant 0 : index
    %c0_13 = arith.constant 0 : index
    %56 = vector.load %arg5[%c0_10, %c0_11, %c0_12, %c0_13] : memref<1x1x8x4xf32, #tpu.memory_space<vmem>>, vector<1x1x8x4xf32>
    %57 = vector.shape_cast %56 : vector<1x1x8x4xf32> to vector<8x4xf32>
    %cst_14 = arith.constant dense<0.000000e+00> : vector<8x4xf32>
    %58 = tpu.matmul %54, %4, %cst_14 {dimension_numbers = #tpu.dot_dimension_numbers<[1], [0], [0], [1], [0, 0, 1, 1], [], []>} : vector<8x256xf32>, vector<256x4xf32>, vector<8x4xf32> -> vector<8x4xf32>
    %59 = arith.addf %57, %58 : vector<8x4xf32>
    %c0_15 = arith.constant 0 : index
    %c0_16 = arith.constant 0 : index
    %c0_17 = arith.constant 0 : index
    %c0_18 = arith.constant 0 : index
    %60 = vector.load %arg5[%c0_15, %c0_16, %c0_17, %c0_18] : memref<1x1x8x4xf32, #tpu.memory_space<vmem>>, vector<1x1x8x4xf32>
    %61 = vector.shape_cast %60 : vector<1x1x8x4xf32> to vector<8x4xf32>
    %62 = vector.shape_cast %59 : vector<8x4xf32> to vector<1x1x8x4xf32>
    tpu.vector_store %arg5[%c0_15, %c0_16, %c0_17, %c0_18], %62 {strides = array<i32>} : memref<1x1x8x4xf32, #tpu.memory_space<vmem>>, vector<1x1x8x4xf32>,
    %c0_19 = arith.constant 0 : index
    %c0_20 = arith.constant 0 : index
    %c0_21 = arith.constant 0 : index
    %c0_22 = arith.constant 0 : index
    %63 = vector.load %arg6[%c0_19, %c0_20, %c0_21, %c0_22] : memref<1x1x8x4xf32, #tpu.memory_space<vmem>>, vector<1x1x8x4xf32>
    %64 = vector.shape_cast %63 : vector<1x1x8x4xf32> to vector<8x4xf32>
    %cst_23 = arith.constant dense<0.000000e+00> : vector<8x4xf32>
    %65 = tpu.matmul %55, %4, %cst_23 {dimension_numbers = #tpu.dot_dimension_numbers<[1], [0], [0], [1], [0, 0, 1, 1], [], []>} : vector<8x256xf32>, vector<256x4xf32>, vector<8x4xf32> -> vector<8x4xf32>
    %66 = arith.addf %64, %65 : vector<8x4xf32>
    %c0_24 = arith.constant 0 : index
    %c0_25 = arith.constant 0 : index
    %c0_26 = arith.constant 0 : index
    %c0_27 = arith.constant 0 : index
    %67 = vector.load %arg6[%c0_24, %c0_25, %c0_26, %c0_27] : memref<1x1x8x4xf32, #tpu.memory_space<vmem>>, vector<1x1x8x4xf32>
    %68 = vector.shape_cast %67 : vector<1x1x8x4xf32> to vector<8x4xf32>
    %69 = vector.shape_cast %66 : vector<8x4xf32> to vector<1x1x8x4xf32>
    tpu.vector_store %arg6[%c0_24, %c0_25, %c0_26, %c0_27], %69 {strides = array<i32>} : memref<1x1x8x4xf32, #tpu.memory_space<vmem>>, vector<1x1x8x4xf32>,
    return
  }
  func.func @transform_0(%arg0: i32, %arg1: i32, %arg2: i32) -> (i32, i32, i32) {
    %c2_i32 = arith.constant 2 : i32
    %0 = arith.muli %arg0, %c2_i32 : i32
    %1 = arith.addi %0, %arg2 : i32
    %c0_i32 = arith.constant 0 : i32
    %c0_i32_0 = arith.constant 0 : i32
    return %arg1, %1, %c0_i32 : i32, i32, i32
  }
  func.func @transform_1(%arg0: i32, %arg1: i32, %arg2: i32) -> (i32, i32, i32) {
    %c2_i32 = arith.constant 2 : i32
    %0 = arith.muli %arg0, %c2_i32 : i32
    %1 = arith.addi %0, %arg2 : i32
    %c0_i32 = arith.constant 0 : i32
    %c0_i32_0 = arith.constant 0 : i32
    return %arg1, %c0_i32, %1 : i32, i32, i32
  }
  func.func @transform_2(%arg0: i32, %arg1: i32, %arg2: i32) -> (i32, i32, i32, i32) {
    %c0_i32 = arith.constant 0 : i32
    %c0_i32_0 = arith.constant 0 : i32
    %c0_i32_1 = arith.constant 0 : i32
    return %arg0, %arg1, %c0_i32, %c0_i32_0 : i32, i32, i32, i32
  }
  func.func @transform_3(%arg0: i32, %arg1: i32, %arg2: i32) -> (i32, i32, i32, i32) {
    %c0_i32 = arith.constant 0 : i32
    %c0_i32_0 = arith.constant 0 : i32
    %c0_i32_1 = arith.constant 0 : i32
    return %arg0, %arg1, %c0_i32, %c0_i32_0 : i32, i32, i32, i32
  }
}

</mosaic_0001>

<llo_original>
// kernel: tpu_custom_call.1
$region0: #{tpu_custom_call.1}
  #allocation0 [shape = 'u32[]', space=smem, size = 0x4, offset = 0x4, fixed_abs, tag = 'smem constant byte address 0x4 - core index']
  #allocation1 [shape = 'u32[72,128]{1,0:T(1,128)}', space=vmem, size = 0x9000, scoped, tag = 'internal scratch']
  %s0 = inlined_call_operand.vmem [shape: f32[2,512,4], index: 0, kind: input, shape index: {}]
  %s1 = inlined_call_operand.vmem [shape: f32[2,3,512], index: 1, kind: input, shape index: {}]
  %s2 = inlined_call_operand.vmem [shape: f32[1,2,8,4], index: 2, kind: output, shape index: {0}]
  %s3 = inlined_call_operand.vmem [shape: f32[1,2,8,4], index: 3, kind: output, shape index: {1}]
  %4 = xla_tuple %s2, %s3
  %s5 = sld [smem:[#allocation0]]
  $region53: #{tpu_custom_call.1} parent=0
    _
  %s7 = ssub.s32 1, %s5
  %s8 = scalar_select 0, %s7, %s5
  loop: start=0, step=1, limit=6
  $region2: #{tpu_custom_call.1} parent=0 // loop_pre_header
    _
  $region3: #{tpu_custom_call.1} parent=0 // loop_header
    %s10 = sphi 0, %s14
    %p11 = scmp.ge.s32.totalorder %s10, 6
    %s17 = sphi 0, %s36
    %s18 = sphi 0, %s32
    %s19 = sphi 0, %s28
    %s20 = sphi 0, %s17
    %s21 = sphi 0, %s18
    %s22 = sphi 0, %s19
    %s23 = sphi 0, %s20
    %s24 = sphi 0, %s21
    %s25 = sphi 0, %s22
    %s45 = sphi 0, %s47
    %s48 = sphi 0, %s45
    %s49 = sphi 0, %s48
    %s65 = sphi 0, %s49
    %s77 = sphi 0, %s79
    %s80 = sphi 0, %s77
    %s81 = sphi 0, %s80
    %s97 = sphi 0, %s81
    %s105 = sphi 0, %s107
    %s108 = sphi 0, %s105
    %s109 = sphi 0, %s108
    %s125 = sphi 0, %s109
    %s133 = sphi 0, %s135
    %s136 = sphi 0, %s133
    %s137 = sphi 0, %s136
    %s153 = sphi 0, %s137
  $region4: #{tpu_custom_call.1} parent=0 // loop_header_branch
    %13 = sbr.rel (%p11) target = $region8
  $region5: #{tpu_custom_call.1} parent=0 // loop_body
    %s15 = ssub.s32 %s10, 1
    %s16 = ssub.s32 %s10, 2
    %s26 = sadd.s32 1, %s19
    %p27 = scmp.ge.s32.totalorder %s26, 2
    %s28 = scalar_select %p27, 0, %s26
    %s29 = sadd.s32 1, %s18
    %s30 = scalar_select %p27, %s29, %s18
    %p31 = scmp.ge.s32.totalorder %s30, 2
    %s32 = scalar_select %p31, 0, %s30
    %s33 = sadd.s32 1, %s17
    %s34 = scalar_select %p31, %s33, %s17
    %p35 = scmp.ge.s32.totalorder %s34, 1
    %s36 = scalar_select %p35, 0, %s34
    %s37 = smul.u32 %s17, 2
    %s38 = sadd.s32 %s37, %s19
    %s39 = smul.u32 %s36, 2
    %s40 = sadd.s32 %s39, %s28
    %s41 = ssub.s32 %s18, %s32
    %s42 = ssub.s32 %s38, %s40
    %s43 = sor.u32 %s41, %s42
    %p44 = scmp.eq.s32.totalorder %s43, 0
    %s46 = sadd.s32 %s45, 1
    %s47 = scalar_select %p44, %s45, %s46
    %p50 = pneg %p44
    %p51 = scmp.eq.s32.totalorder %s10, 3
    %p52 = por %p50, %p51
    %p53 = scmp.ne.s32.totalorder %s45, %s48
    %p54 = scmp.eq.s32.totalorder %s10, 0
    %p55 = por %p53, %p54
    %p56 = scmp.ne.s32.totalorder %s45, %s48
    %p57 = scmp.eq.s32.totalorder %s15, 3
    %p58 = por %p56, %p57
    %p59 = scmp.ne.s32.totalorder %s48, %s49
    %p60 = scmp.eq.s32.totalorder %s15, 0
    %p61 = por %p59, %p60
    %p62 = scmp.ne.s32.totalorder %s48, %s49
    %p63 = scmp.eq.s32.totalorder %s16, 3
    %p64 = por %p62, %p63
    %p66 = scmp.ne.s32.totalorder %s49, %s65
    %p67 = scmp.eq.s32.totalorder %s16, 0
    %p68 = por %p66, %p67
    %s69 = smul.u32 %s17, 2
    %s70 = sadd.s32 %s69, %s19
    %s71 = smul.u32 %s36, 2
    %s72 = sadd.s32 %s71, %s28
    %s73 = ssub.s32 %s18, %s32
    %s74 = ssub.s32 %s70, %s72
    %s75 = sor.u32 %s73, %s74
    %p76 = scmp.eq.s32.totalorder %s75, 0
    %s78 = sadd.s32 %s77, 1
    %s79 = scalar_select %p76, %s77, %s78
    %p82 = pneg %p76
    %p83 = scmp.eq.s32.totalorder %s10, 3
    %p84 = por %p82, %p83
    %p85 = scmp.ne.s32.totalorder %s77, %s80
    %p86 = scmp.eq.s32.totalorder %s10, 0
    %p87 = por %p85, %p86
    %p88 = scmp.ne.s32.totalorder %s77, %s80
    %p89 = scmp.eq.s32.totalorder %s15, 3
    %p90 = por %p88, %p89
    %p91 = scmp.ne.s32.totalorder %s80, %s81
    %p92 = scmp.eq.s32.totalorder %s15, 0
    %p93 = por %p91, %p92
    %p94 = scmp.ne.s32.totalorder %s80, %s81
    %p95 = scmp.eq.s32.totalorder %s16, 3
    %p96 = por %p94, %p95
    %p98 = scmp.ne.s32.totalorder %s81, %s97
    %p99 = scmp.eq.s32.totalorder %s16, 0
    %p100 = por %p98, %p99
    %s101 = ssub.s32 %s17, %s36
    %s102 = ssub.s32 %s18, %s32
    %s103 = sor.u32 %s101, %s102
    %p104 = scmp.eq.s32.totalorder %s103, 0
    %s106 = sadd.s32 %s105, 1
    %s107 = scalar_select %p104, %s105, %s106
    %p110 = pneg %p104
    %p111 = scmp.eq.s32.totalorder %s10, 3
    %p112 = por %p110, %p111
    %p113 = scmp.ne.s32.totalorder %s105, %s108
    %p114 = scmp.eq.s32.totalorder %s10, 0
    %p115 = por %p113, %p114
    %p116 = scmp.ne.s32.totalorder %s105, %s108
    %p117 = scmp.eq.s32.totalorder %s15, 3
    %p118 = por %p116, %p117
    %p119 = scmp.ne.s32.totalorder %s108, %s109
    %p120 = scmp.eq.s32.totalorder %s15, 0
    %p121 = por %p119, %p120
    %p122 = scmp.ne.s32.totalorder %s108, %s109
    %p123 = scmp.eq.s32.totalorder %s16, 3
    %p124 = por %p122, %p123
    %p126 = scmp.ne.s32.totalorder %s109, %s125
    %p127 = scmp.eq.s32.totalorder %s16, 0
    %p128 = por %p126, %p127
    %s129 = ssub.s32 %s17, %s36
    %s130 = ssub.s32 %s18, %s32
    %s131 = sor.u32 %s129, %s130
    %p132 = scmp.eq.s32.totalorder %s131, 0
    %s134 = sadd.s32 %s133, 1
    %s135 = scalar_select %p132, %s133, %s134
    %p138 = pneg %p132
    %p139 = scmp.eq.s32.totalorder %s10, 3
    %p140 = por %p138, %p139
    %p141 = scmp.ne.s32.totalorder %s133, %s136
    %p142 = scmp.eq.s32.totalorder %s10, 0
    %p143 = por %p141, %p142
    %p144 = scmp.ne.s32.totalorder %s133, %s136
    %p145 = scmp.eq.s32.totalorder %s15, 3
    %p146 = por %p144, %p145
    %p147 = scmp.ne.s32.totalorder %s136, %s137
    %p148 = scmp.eq.s32.totalorder %s15, 0
    %p149 = por %p147, %p148
    %p150 = scmp.ne.s32.totalorder %s136, %s137
    %p151 = scmp.eq.s32.totalorder %s16, 3
    %p152 = por %p150, %p151
    %p154 = scmp.ne.s32.totalorder %s137, %s153
    %p155 = scmp.eq.s32.totalorder %s16, 0
    %p156 = por %p154, %p155
    %p157 = scmp.le.s32.totalorder 1, %s10
    %p158 = scmp.lt.s32.totalorder %s10, 5
    %p159 = pnand %p157, %p158
    %p160 = pneg %p159
    // Predicated region
    $region9: #{tpu_custom_call.1} parent=5 // pred_check
      _
    $region10: #{tpu_custom_call.1} parent=5 // pred_check_branch
      %162 = sbr.rel (%p159) target = $region12
    $region11: #{tpu_custom_call.1} parent=5 // pred_region
      %s163 = ssub.s32 %s10, 1
    $region12: #{tpu_custom_call.1} parent=5 // pred_fallthru
      _
    %p164 = scmp.lt.s32.totalorder %s10, 4
    // Predicated region
    $region13: #{tpu_custom_call.1} parent=5 // pred_check
      %p165 = pneg %p164
    $region14: #{tpu_custom_call.1} parent=5 // pred_check_branch
      %167 = sbr.rel (%p165) target = $region16
    $region15: #{tpu_custom_call.1} parent=5 // pred_region
      // Predicated region
      $region17: #{tpu_custom_call.1} parent=15 // pred_check
        %p168 = pneg %p55
      $region18: #{tpu_custom_call.1} parent=15 // pred_check_branch
        %170 = sbr.rel (%p168) target = $region20
      $region19: #{tpu_custom_call.1} parent=15 // pred_region
        %s171 = smul.u32 %s17, 2
        %s172 = sadd.s32 %s171, %s19
        %s173 = smul.u32 32, %s172
        %p174 = scmp.lt.s32.totalorder %s18, 1
        %s175 = scalar_select %p174, %s18, 1
        %p176 = scmp.lt.s32.totalorder %s173, 63
        %s177 = scalar_select %p176, %s173, 63
        %s178 = smul.addr %s175, 64
        %s179 = sadd.s32 %s177, %s178
        %s180 = smul.addr %s179, 8
        %s181 = scalar_lea.vmem %s0, %s180
        %s182 = smul.u32 %s17, 2
        %s183 = sadd.s32 %s182, %s19
        %s184 = smul.u32 32, %s183
      $region20: #{tpu_custom_call.1} parent=15 // pred_fallthru
        _
      // Predicated region
      $region21: #{tpu_custom_call.1} parent=15 // pred_check
        %p185 = pneg %p87
      $region22: #{tpu_custom_call.1} parent=15 // pred_check_branch
        %187 = sbr.rel (%p185) target = $region24
      $region23: #{tpu_custom_call.1} parent=15 // pred_region
        %s188 = smul.u32 %s17, 2
        %s189 = sadd.s32 %s188, %s19
        %s190 = smul.u32 2, %s189
        %p191 = scmp.lt.s32.totalorder %s18, 1
        %s192 = scalar_select %p191, %s18, 1
        %p193 = scmp.lt.s32.totalorder %s190, 3
        %s194 = scalar_select %p193, %s190, 3
        %s195 = smul.addr %s192, 4
        %s196 = sadd.s32 %s194, %s195
        %s197 = smul.addr %s196, 4
        %s198 = scalar_lea.vmem %s1, %s197
        %s199 = smul.u32 %s17, 2
        %s200 = sadd.s32 %s199, %s19
        %s201 = smul.u32 2, %s200
      $region24: #{tpu_custom_call.1} parent=15 // pred_fallthru
        _
    $region16: #{tpu_custom_call.1} parent=5 // pred_fallthru
      _
    %p202 = scmp.le.s32.totalorder 1, %s10
    %p203 = scmp.lt.s32.totalorder %s10, 5
    %p204 = pnand %p202, %p203
    %p205 = pneg %p204
    // Predicated region
    $region25: #{tpu_custom_call.1} parent=5 // pred_check
      _
    $region26: #{tpu_custom_call.1} parent=5 // pred_check_branch
      %207 = sbr.rel (%p204) target = $region28
    $region27: #{tpu_custom_call.1} parent=5 // pred_region
      %s208 = ssub.s32 %s10, 1
      %s209 = smul.u32 %s20, 2
      %s210 = sadd.s32 %s209, %s22
      %s211 = smul.u32 32, %s210
      %p212 = scmp.lt.s32.totalorder %s21, 1
      %s213 = scalar_select %p212, %s21, 1
      %p214 = scmp.lt.s32.totalorder %s211, 63
      %s215 = scalar_select %p214, %s211, 63
      %s216 = smul.addr %s213, 64
      %s217 = sadd.s32 %s215, %s216
      %s218 = smul.addr %s217, 8
      %s219 = scalar_lea.vmem %s0, %s218
      %p220 = pneg %p61
      %p221 = pneg %p58
      %s222 = smul.u32 %s20, 2
      %s223 = sadd.s32 %s222, %s22
      %s224 = smul.u32 2, %s223
      %p225 = scmp.lt.s32.totalorder %s21, 1
      %s226 = scalar_select %p225, %s21, 1
      %p227 = scmp.lt.s32.totalorder %s224, 3
      %s228 = scalar_select %p227, %s224, 3
      %s229 = smul.addr %s226, 4
      %s230 = sadd.s32 %s228, %s229
      %s231 = smul.addr %s230, 4
      %s232 = scalar_lea.vmem %s1, %s231
      %p233 = pneg %p93
      %p234 = pneg %p90
      %p235 = pneg %p121
      %p236 = pneg %p118
      %p237 = scmp.lt.s32.totalorder %s20, 0
      %s238 = scalar_select %p237, %s20, 0
      %p239 = scmp.lt.s32.totalorder %s21, 1
      %s240 = scalar_select %p239, %s21, 1
      %s241 = smul.addr %s238, 2
      %s242 = sadd.s32 %s240, %s241
      %s243 = smul.addr %s242, 8
      %s244 = scalar_lea.vmem %s2, %s243
      %p245 = pneg %p149
      %p246 = pneg %p146
      %p247 = scmp.lt.s32.totalorder %s20, 0
      %s248 = scalar_select %p247, %s20, 0
      %p249 = scmp.lt.s32.totalorder %s21, 1
      %s250 = scalar_select %p249, %s21, 1
      %s251 = smul.addr %s248, 2
      %s252 = sadd.s32 %s250, %s251
      %s253 = smul.addr %s252, 8
      %s254 = scalar_lea.vmem %s3, %s253
      %s255 = smul.u32 %s20, 2
      %s256 = sadd.s32 %s255, %s22
      %s257 = smul.u32 32, %s256
      %p258 = scmp.lt.s32.totalorder %s21, 1
      %s259 = scalar_select %p258, %s21, 1
      %p260 = scmp.lt.s32.totalorder %s257, 63
      %s261 = scalar_select %p260, %s257, 63
      %s262 = smul.addr %s259, 64
      %s263 = sadd.s32 %s261, %s262
      %s264 = smul.addr %s263, 8
      %s265 = scalar_lea.vmem %s0, %s264
      %s266 = smul.u32 %s20, 2
      %s267 = sadd.s32 %s266, %s22
      %s268 = smul.u32 32, %s267
      %s269 = smul.u32 %s20, 2
      %s270 = sadd.s32 %s269, %s22
      %s271 = smul.u32 2, %s270
      %p272 = scmp.lt.s32.totalorder %s21, 1
      %s273 = scalar_select %p272, %s21, 1
      %p274 = scmp.lt.s32.totalorder %s271, 3
      %s275 = scalar_select %p274, %s271, 3
      %s276 = smul.addr %s273, 4
      %s277 = sadd.s32 %s275, %s276
      %s278 = smul.addr %s277, 4
      %s279 = scalar_lea.vmem %s1, %s278
      %s280 = smul.u32 %s20, 2
      %s281 = sadd.s32 %s280, %s22
      %s282 = smul.u32 2, %s281
      %p283 = scmp.lt.s32.totalorder %s20, 0
      %s284 = scalar_select %p283, %s20, 0
      %p285 = scmp.lt.s32.totalorder %s21, 1
      %s286 = scalar_select %p285, %s21, 1
      %s287 = smul.addr %s284, 2
      %s288 = sadd.s32 %s286, %s287
      %s289 = smul.addr %s288, 8
      %s290 = scalar_lea.vmem %s2, %s289
      %p291 = scmp.lt.s32.totalorder %s20, 0
      %s292 = scalar_select %p291, %s20, 0
      %p293 = scmp.lt.s32.totalorder %s21, 1
      %s294 = scalar_select %p293, %s21, 1
      %s295 = smul.addr %s292, 2
      %s296 = sadd.s32 %s294, %s295
      %s297 = smul.addr %s296, 8
      %s298 = scalar_lea.vmem %s3, %s297
      %p299 = scmp.eq.s32.totalorder %s22, 0
      // Predicated region
      $region29: #{tpu_custom_call.1} parent=27 // pred_check
        %p300 = pneg %p299
      $region30: #{tpu_custom_call.1} parent=27 // pred_check_branch
        %302 = sbr.rel (%p300) target = $region32
      $region31: #{tpu_custom_call.1} parent=27 // pred_region
        %vm303 = vcmask 31744
        %304 = vst.msk [vmem:[%s290] sm:$0xff] %vm303, 0.0
        %305 = vst.msk [vmem:[%s298] sm:$0xff] %vm303, 0.0
      $region32: #{tpu_custom_call.1} parent=27 // pred_fallthru
        _
      %v306 = vld [vmem:[%s265] sm:$0xff]
      %v307 = vld [vmem:[%s265 + $0x8] sm:$0xff]
      %v308 = vld [vmem:[%s265 + $0x10] sm:$0xff]
      %v309 = vld [vmem:[%s265 + $0x18] sm:$0xff]
      %v310 = vld [vmem:[%s265 + $0x20] sm:$0xff]
      %v311 = vld [vmem:[%s265 + $0x28] sm:$0xff]
      %v312 = vld [vmem:[%s265 + $0x30] sm:$0xff]
      %v313 = vld [vmem:[%s265 + $0x38] sm:$0xff]
      %v314 = vld [vmem:[%s265 + $0x40] sm:$0xff]
      %v315 = vld [vmem:[%s265 + $0x48] sm:$0xff]
      %v316 = vld [vmem:[%s265 + $0x50] sm:$0xff]
      %v317 = vld [vmem:[%s265 + $0x58] sm:$0xff]
      %v318 = vld [vmem:[%s265 + $0x60] sm:$0xff]
      %v319 = vld [vmem:[%s265 + $0x68] sm:$0xff]
      %v320 = vld [vmem:[%s265 + $0x70] sm:$0xff]
      %v321 = vld [vmem:[%s265 + $0x78] sm:$0xff]
      %v322 = vld [vmem:[%s265 + $0x80] sm:$0xff]
      %v323 = vld [vmem:[%s265 + $0x88] sm:$0xff]
      %v324 = vld [vmem:[%s265 + $0x90] sm:$0xff]
      %v325 = vld [vmem:[%s265 + $0x98] sm:$0xff]
      %v326 = vld [vmem:[%s265 + $0xa0] sm:$0xff]
      %v327 = vld [vmem:[%s265 + $0xa8] sm:$0xff]
      %v328 = vld [vmem:[%s265 + $0xb0] sm:$0xff]
      %v329 = vld [vmem:[%s265 + $0xb8] sm:$0xff]
      %v330 = vld [vmem:[%s265 + $0xc0] sm:$0xff]
      %v331 = vld [vmem:[%s265 + $0xc8] sm:$0xff]
      %v332 = vld [vmem:[%s265 + $0xd0] sm:$0xff]
      %v333 = vld [vmem:[%s265 + $0xd8] sm:$0xff]
      %v334 = vld [vmem:[%s265 + $0xe0] sm:$0xff]
      %v335 = vld [vmem:[%s265 + $0xe8] sm:$0xff]
      %v336 = vld [vmem:[%s265 + $0xf0] sm:$0xff]
      %v337 = vld [vmem:[%s265 + $0xf8] sm:$0xff]
      %v338 = vld [vmem:[%s279] sm:$0x77]
      %v339 = vmul.f32 %v338, 6.2831855
      %v340 = vand.u32 2147483647, %v339
      %vm341 = vcmp.le.f32.partialorder %v340, 0.7853982
      %vm342 = vcmp.lt.s32.totalorder %v339, 0
      %v343 = vand.u32 %v339, 2139095040
      %v344 = vshrl.u32 %v343, 23
      %v345 = vsub.s32 %v344, 127
      %v346 = vand.u32 2147483647, %v339
      %v347 = vand.u32 %v346, 8388607
      %v348 = vor.u32 %v347, 8388608
      %v349 = vsub.s32 0, %v348
      %v350 = vadd.s32 %v345, 1
      %vm351 = vcmp.gt.s32.totalorder %v350, 0
      %v352 = vsel %vm351, %v350, 0
      %v353 = vshrl.u32 %v352, 5
      %v354 = vand.u32 %v352, 31
      %v355 = vsub.s32 32, %v354
      %v356 = vshrl.u32 683565275, %v355
      %v357 = vshll.u32 683565275, %v354
      %v358 = vshrl.u32 2475754826, %v355
      %v359 = vor.u32 %v357, %v358
      %v360 = vshll.u32 2475754826, %v354
      %v361 = vshrl.u32 2131351028, %v355
      %v362 = vor.u32 %v360, %v361
      %v363 = vshll.u32 2131351028, %v354
      %v364 = vshrl.u32 2102212464, %v355
      %v365 = vor.u32 %v363, %v364
      %v366 = vshll.u32 2102212464, %v354
      %v367 = vshrl.u32 920167782, %v355
      %v368 = vor.u32 %v366, %v367
      %v369 = vshll.u32 920167782, %v354
      %v370 = vshrl.u32 1326507024, %v355
      %v371 = vor.u32 %v369, %v370
      %vm372 = vcmp.lt.s32.totalorder %v353, 1
      %vm373 = vcmp.lt.s32.totalorder %v353, 2
      %vm374 = vcmp.lt.s32.totalorder %v353, 3
      %vm375 = vcmp.lt.s32.totalorder %v353, 4
      %v376 = vsel %vm372, %v356, %v359
      %v377 = vsel %vm375, %v365, 2102212464
      %v378 = vsel %vm374, %v362, %v377
      %v379 = vsel %vm373, %v376, %v378
      %v380 = vsel %vm372, %v359, %v362
      %v381 = vsel %vm375, %v368, 920167782
      %v382 = vsel %vm374, %v365, %v381
      %v383 = vsel %vm373, %v380, %v382
      %v384 = vsel %vm372, %v362, %v365
      %v385 = vsel %vm375, %v371, 1326507024
      %v386 = vsel %vm374, %v368, %v385
      %v387 = vsel %vm373, %v384, %v386
      %v388 = vshll.u32 %v348, 8
      %v389 = vand.u32 %v388, 65535
      %v390 = vshrl.u32 %v388, 16
      %v391 = vand.u32 %v387, 65535
      %v392 = vshrl.u32 %v387, 16
      %v393 = vmul.u32 %v389, %v391
      %v394 = vmul.u32 %v389, %v392
      %v395 = vmul.u32 %v390, %v391
      %v396 = vmul.u32 %v390, %v392
      %v397 = vshll.u32 %v394, 16
      %v398 = vshrl.u32 %v394, 16
      %v399 = vshll.u32 %v395, 16
      %v400 = vshrl.u32 %v395, 16
      %vm401 = vc.u32 %v393, %v397
      %v402 = vsel %vm401, 1, 0
      %v403 = vadd.s32 %v393, %v397
      %v404 = vadd.s32 %v396, %v402
      %vm405 = vc.u32 %v403, %v399
      %v406 = vsel %vm405, 1, 0
      %v407 = vadd.s32 %v403, %v399
      %v408 = vadd.s32 %v404, %v406
      %v409 = vadd.s32 %v408, %v398
      %v410 = vadd.s32 %v409, %v400
      %v411 = vand.u32 %v388, 65535
      %v412 = vshrl.u32 %v388, 16
      %v413 = vand.u32 %v383, 65535
      %v414 = vshrl.u32 %v383, 16
      %v415 = vmul.u32 %v411, %v413
      %v416 = vmul.u32 %v411, %v414
      %v417 = vmul.u32 %v412, %v413
      %v418 = vmul.u32 %v412, %v414
      %v419 = vshll.u32 %v416, 16
      %v420 = vshrl.u32 %v416, 16
      %v421 = vshll.u32 %v417, 16
      %v422 = vshrl.u32 %v417, 16
      %vm423 = vc.u32 %v415, %v419
      %v424 = vsel %vm423, 1, 0
      %v425 = vadd.s32 %v415, %v419
      %v426 = vadd.s32 %v418, %v424
      %vm427 = vc.u32 %v425, %v421
      %v428 = vsel %vm427, 1, 0
      %v429 = vadd.s32 %v425, %v421
      %v430 = vadd.s32 %v426, %v428
      %v431 = vadd.s32 %v430, %v420
      %v432 = vadd.s32 %v431, %v422
      %v433 = vmul.u32 %v388, %v379
      %v434 = vadd.s32 %v410, %v429
      %vm435 = vc.u32 %v410, %v429
      %v436 = vadd.s32 %v432, 1
      %v437 = vsel %vm435, %v436, %v432
      %v438 = vadd.s32 %v433, %v437
      %v439 = vadd.s32 %v438, 536870912
      %v440 = vshrl.u32 %v439, 30
      %v441 = vshll.u32 %v440, 30
      %v442 = vsub.s32 %v438, %v441
      %vm443 = vcmp.lt.s32.totalorder %v442, 0
      %v444 = vsub.s32 0, %v442
      %v445 = vsel %vm443, %v444, %v442
      %v446 = vclz %v445
      %v447 = vsub.s32 %v446, 2
      %vm448 = vcmp.gt.s32.totalorder 0, %v447
      %v449 = vsel %vm448, 0, %v447
      %v450 = vsub.s32 32, %v449
      %v451 = vshll.u32 %v442, %v449
      %v452 = vshrl.u32 %v434, %v450
      %v453 = vor.u32 %v451, %v452
      %v454 = vsub.s32 4294967266, %v449
      %v455 = vadd.s32 %v454, 127
      %v456 = vshll.u32 %v455, 23
      %v457 = vor.u32 4788187, %v456
      %v458 = vand.u32 2147483647, %v457
      %v460 = vcvt.s32.f32 %v453
      %v461 = vmul.f32 %v460, %v458
      %v462 = vxor.u32 %v461, 2147483648
      %v463 = vsel %vm342, %v462, %v461
      %v464 = vsub.s32 4, %v440
      %v465 = vsel %vm342, %v464, %v440
      %v466 = vsel %vm341, %v339, %v463
      %v467 = vsel %vm341, 0, %v465
      %v468 = vmul.f32 %v466, %v466
      %v469 = vmul.f32 %v468, -0.001358992
      %v470 = vadd.f32 %v469, 0.041655596
      %v471 = vmul.f32 %v468, %v470
      %v472 = vadd.f32 %v471, -0.4999988
      %v473 = vmul.f32 %v468, %v472
      %v474 = vadd.f32 1.0, %v473
      %v475 = vmul.f32 %v466, %v466
      %v476 = vmul.f32 %v475, -0.00019511016
      %v477 = vadd.f32 %v476, 0.008332121
      %v478 = vmul.f32 %v475, %v477
      %v479 = vadd.f32 %v478, -0.16666654
      %v480 = vmul.f32 %v475, %v479
      %v481 = vadd.f32 %v480, 1.0
      %v482 = vmul.f32 %v481, %v466
      %vm483 = vweird.f32 %v339
      %v484 = vand.u32 %v467, 3
      %vm485 = vcmp.lt.s32.totalorder %v484, 2
      %vm486 = vcmp.eq.s32.totalorder %v484, 0
      %v487 = vxor.u32 %v482, 2147483648
      %v488 = vsel %vm486, %v474, %v487
      %vm489 = vcmp.eq.s32.totalorder %v484, 2
      %v490 = vxor.u32 %v474, 2147483648
      %v491 = vsel %vm489, %v490, %v482
      %v492 = vsel %vm485, %v488, %v491
      %v493 = vsel %vm483, nan, %v492
      %v494 = vand.u32 2147483647, %v339
      %vm495 = vcmp.le.f32.partialorder %v494, 0.7853982
      %vm496 = vcmp.lt.s32.totalorder %v339, 0
      %v497 = vand.u32 %v339, 2139095040
      %v498 = vshrl.u32 %v497, 23
      %v499 = vsub.s32 %v498, 127
      %v500 = vand.u32 2147483647, %v339
      %v501 = vand.u32 %v500, 8388607
      %v502 = vor.u32 %v501, 8388608
      %v503 = vsub.s32 0, %v502
      %v504 = vadd.s32 %v499, 1
      %vm505 = vcmp.gt.s32.totalorder %v504, 0
      %v506 = vsel %vm505, %v504, 0
      %v507 = vshrl.u32 %v506, 5
      %v508 = vand.u32 %v506, 31
      %v509 = vsub.s32 32, %v508
      %v510 = vshrl.u32 683565275, %v509
      %v511 = vshll.u32 683565275, %v508
      %v512 = vshrl.u32 2475754826, %v509
      %v513 = vor.u32 %v511, %v512
      %v514 = vshll.u32 2475754826, %v508
      %v515 = vshrl.u32 2131351028, %v509
      %v516 = vor.u32 %v514, %v515
      %v517 = vshll.u32 2131351028, %v508
      %v518 = vshrl.u32 2102212464, %v509
      %v519 = vor.u32 %v517, %v518
      %v520 = vshll.u32 2102212464, %v508
      %v521 = vshrl.u32 920167782, %v509
      %v522 = vor.u32 %v520, %v521
      %v523 = vshll.u32 920167782, %v508
      %v524 = vshrl.u32 1326507024, %v509
      %v525 = vor.u32 %v523, %v524
      %vm526 = vcmp.lt.s32.totalorder %v507, 1
      %vm527 = vcmp.lt.s32.totalorder %v507, 2
      %vm528 = vcmp.lt.s32.totalorder %v507, 3
      %vm529 = vcmp.lt.s32.totalorder %v507, 4
      %v530 = vsel %vm526, %v510, %v513
      %v531 = vsel %vm529, %v519, 2102212464
      %v532 = vsel %vm528, %v516, %v531
      %v533 = vsel %vm527, %v530, %v532
      %v534 = vsel %vm526, %v513, %v516
      %v535 = vsel %vm529, %v522, 920167782
      %v536 = vsel %vm528, %v519, %v535
      %v537 = vsel %vm527, %v534, %v536
      %v538 = vsel %vm526, %v516, %v519
      %v539 = vsel %vm529, %v525, 1326507024
      %v540 = vsel %vm528, %v522, %v539
      %v541 = vsel %vm527, %v538, %v540
      %v542 = vshll.u32 %v502, 8
      %v543 = vand.u32 %v542, 65535
      %v544 = vshrl.u32 %v542, 16
      %v545 = vand.u32 %v541, 65535
      %v546 = vshrl.u32 %v541, 16
      %v547 = vmul.u32 %v543, %v545
      %v548 = vmul.u32 %v543, %v546
      %v549 = vmul.u32 %v544, %v545
      %v550 = vmul.u32 %v544, %v546
      %v551 = vshll.u32 %v548, 16
      %v552 = vshrl.u32 %v548, 16
      %v553 = vshll.u32 %v549, 16
      %v554 = vshrl.u32 %v549, 16
      %vm555 = vc.u32 %v547, %v551
      %v556 = vsel %vm555, 1, 0
      %v557 = vadd.s32 %v547, %v551
      %v558 = vadd.s32 %v550, %v556
      %vm559 = vc.u32 %v557, %v553
      %v560 = vsel %vm559, 1, 0
      %v561 = vadd.s32 %v557, %v553
      %v562 = vadd.s32 %v558, %v560
      %v563 = vadd.s32 %v562, %v552
      %v564 = vadd.s32 %v563, %v554
      %v565 = vand.u32 %v542, 65535
      %v566 = vshrl.u32 %v542, 16
      %v567 = vand.u32 %v537, 65535
      %v568 = vshrl.u32 %v537, 16
      %v569 = vmul.u32 %v565, %v567
      %v570 = vmul.u32 %v565, %v568
      %v571 = vmul.u32 %v566, %v567
      %v572 = vmul.u32 %v566, %v568
      %v573 = vshll.u32 %v570, 16
      %v574 = vshrl.u32 %v570, 16
      %v575 = vshll.u32 %v571, 16
      %v576 = vshrl.u32 %v571, 16
      %vm577 = vc.u32 %v569, %v573
      %v578 = vsel %vm577, 1, 0
      %v579 = vadd.s32 %v569, %v573
      %v580 = vadd.s32 %v572, %v578
      %vm581 = vc.u32 %v579, %v575
      %v582 = vsel %vm581, 1, 0
      %v583 = vadd.s32 %v579, %v575
      %v584 = vadd.s32 %v580, %v582
      %v585 = vadd.s32 %v584, %v574
      %v586 = vadd.s32 %v585, %v576
      %v587 = vmul.u32 %v542, %v533
      %v588 = vadd.s32 %v564, %v583
      %vm589 = vc.u32 %v564, %v583
      %v590 = vadd.s32 %v586, 1
      %v591 = vsel %vm589, %v590, %v586
      %v592 = vadd.s32 %v587, %v591
      %v593 = vadd.s32 %v592, 536870912
      %v594 = vshrl.u32 %v593, 30
      %v595 = vshll.u32 %v594, 30
      %v596 = vsub.s32 %v592, %v595
      %vm597 = vcmp.lt.s32.totalorder %v596, 0
      %v598 = vsub.s32 0, %v596
      %v599 = vsel %vm597, %v598, %v596
      %v600 = vclz %v599
      %v601 = vsub.s32 %v600, 2
      %vm602 = vcmp.gt.s32.totalorder 0, %v601
      %v603 = vsel %vm602, 0, %v601
      %v604 = vsub.s32 32, %v603
      %v605 = vshll.u32 %v596, %v603
      %v606 = vshrl.u32 %v588, %v604
      %v607 = vor.u32 %v605, %v606
      %v608 = vsub.s32 4294967266, %v603
      %v609 = vadd.s32 %v608, 127
      %v610 = vshll.u32 %v609, 23
      %v611 = vor.u32 4788187, %v610
      %v612 = vand.u32 2147483647, %v611
      %v614 = vcvt.s32.f32 %v607
      %v615 = vmul.f32 %v614, %v612
      %v616 = vxor.u32 %v615, 2147483648
      %v617 = vsel %vm496, %v616, %v615
      %v618 = vsub.s32 4, %v594
      %v619 = vsel %vm496, %v618, %v594
      %v620 = vsel %vm495, %v339, %v617
      %v621 = vsel %vm495, 0, %v619
      %v622 = vmul.f32 %v620, %v620
      %v623 = vmul.f32 %v622, -0.001358992
      %v624 = vadd.f32 %v623, 0.041655596
      %v625 = vmul.f32 %v622, %v624
      %v626 = vadd.f32 %v625, -0.4999988
      %v627 = vmul.f32 %v622, %v626
      %v628 = vadd.f32 1.0, %v627
      %v629 = vmul.f32 %v620, %v620
      %v630 = vmul.f32 %v629, -0.00019511016
      %v631 = vadd.f32 %v630, 0.008332121
      %v632 = vmul.f32 %v629, %v631
      %v633 = vadd.f32 %v632, -0.16666654
      %v634 = vmul.f32 %v629, %v633
      %v635 = vadd.f32 %v634, 1.0
      %v636 = vmul.f32 %v635, %v620
      %vm637 = vweird.f32 %v339
      %v638 = vadd.s32 %v621, 3
      %v639 = vand.u32 %v638, 3
      %vm640 = vcmp.lt.s32.totalorder %v639, 2
      %vm641 = vcmp.eq.s32.totalorder %v639, 0
      %v642 = vxor.u32 %v636, 2147483648
      %v643 = vsel %vm641, %v628, %v642
      %vm644 = vcmp.eq.s32.totalorder %v639, 2
      %v645 = vxor.u32 %v628, 2147483648
      %v646 = vsel %vm644, %v645, %v636
      %v647 = vsel %vm640, %v643, %v646
      %v648 = vsel %vm637, nan, %v647
      %v649 = vmul.f32 %v648, 0.0
      %v650 = vadd.f32 %v493, %v649
      %v651 = vmul.f32 %v493, 0.0
      %v652 = vsub.f32 %v651, %v648
      %v654 = vperm.slane %v650, 2
      %v655 = vperm.slane %v650, 6
      %vm658 = vcmask 1040384
      %v659 = vsel %vm658, 1.0, %v654
      %v660 = vsel %vm658, 1.0, %v655
      %v662 = vperm.slane %v652, 2
      %v663 = vperm.slane %v652, 6
      %v666 = vsel %vm658, 0.0, %v662
      %v667 = vsel %vm658, 0.0, %v663
      %v669 = vperm.slane %v493, 1
      %v670 = vperm.slane %v493, 5
      %v673 = vperm.slane %v669, 1
      %v674 = vperm.slane %v670, 1
      %v675 = vmul.f32 %v659, %v673
      %v676 = vmul.f32 %v660, %v674
      %v678 = vperm.slane %v648, 1
      %v679 = vperm.slane %v648, 5
      %v682 = vperm.slane %v678, 1
      %v683 = vperm.slane %v679, 1
      %v684 = vmul.f32 %v666, %v682
      %v685 = vmul.f32 %v667, %v683
      %v686 = vadd.f32 %v675, %v684
      %v687 = vadd.f32 %v676, %v685
      %v688 = vmul.f32 %v666, %v673
      %v689 = vmul.f32 %v667, %v674
      %v690 = vmul.f32 %v659, %v682
      %v691 = vmul.f32 %v660, %v683
      %v692 = vsub.f32 %v688, %v690
      %v693 = vsub.f32 %v689, %v691
      %v696 = vrot.slane %v686, 6
      %v697 = vrot.slane %v687, 6
      %vm700 = vcmask 1041408
      %v701 = vsel %vm700, %v659, %v696
      %v702 = vsel %vm700, %v660, %v697
      %v705 = vrot.slane %v692, 6
      %v706 = vrot.slane %v693, 6
      %v709 = vsel %vm700, %v666, %v705
      %v710 = vsel %vm700, %v667, %v706
      %v711 = vperm.slane %v493, 0
      %v712 = vperm.slane %v493, 4
      %v715 = vperm.slane %v711, 0
      %v716 = vperm.slane %v712, 0
      %v717 = vmul.f32 %v701, %v715
      %v718 = vmul.f32 %v702, %v716
      %v719 = vperm.slane %v648, 0
      %v720 = vperm.slane %v648, 4
      %v723 = vperm.slane %v719, 0
      %v724 = vperm.slane %v720, 0
      %v725 = vmul.f32 %v709, %v723
      %v726 = vmul.f32 %v710, %v724
      %v727 = vadd.f32 %v717, %v725
      %v728 = vadd.f32 %v718, %v726
      %v729 = vmul.f32 %v709, %v715
      %v730 = vmul.f32 %v710, %v716
      %v731 = vmul.f32 %v701, %v723
      %v732 = vmul.f32 %v702, %v724
      %v733 = vsub.f32 %v729, %v731
      %v734 = vsub.f32 %v730, %v732
      %v737 = vrot.slane %v727, 4
      %v738 = vrot.slane %v728, 4
      %vm741 = vcmask 1043456
      %v742 = vsel %vm741, %v701, %v737
      %v743 = vsel %vm741, %v702, %v738
      %v746 = vrot.slane %v733, 4
      %v747 = vrot.slane %v734, 4
      %v750 = vsel %vm741, %v709, %v746
      %v751 = vsel %vm741, %v710, %v747
      %v752 = vld [vmem:[%s290] sm:$0xff]
      %753 = vmatpush.msra.mxu0 %v321
      %754 = vmatpush.msra.mxu0 %v320
      %755 = vmatpush.msra.mxu0 %v319
      %756 = vmatpush.msra.mxu0 %v318
      %757 = vmatpush.msra.mxu0 %v317
      %758 = vmatpush.msra.mxu0 %v316
      %759 = vmatpush.msra.mxu0 %v315
      %760 = vmatpush.msra.mxu0 %v314
      %761 = vmatpush.msra.mxu0 %v313
      %762 = vmatpush.msra.mxu0 %v312
      %763 = vmatpush.msra.mxu0 %v311
      %764 = vmatpush.msra.mxu0 %v310
      %765 = vmatpush.msra.mxu0 %v309
      %766 = vmatpush.msra.mxu0 %v308
      %767 = vmatpush.msra.mxu0 %v307
      %768 = vmatpush.msra.mxu0 %v306
      %769 = vmatmul.f32.gmra.mxu0 %v742
      %v770 = vpop.f32.mrf.mxu0
      %v771 = vadd.f32 0.0, %v770
      %772 = vdwg.mxu0
      %773 = vmatpush.msra.mxu0 %v337
      %774 = vmatpush.msra.mxu0 %v336
      %775 = vmatpush.msra.mxu0 %v335
      %776 = vmatpush.msra.mxu0 %v334
      %777 = vmatpush.msra.mxu0 %v333
      %778 = vmatpush.msra.mxu0 %v332
      %779 = vmatpush.msra.mxu0 %v331
      %780 = vmatpush.msra.mxu0 %v330
      %781 = vmatpush.msra.mxu0 %v329
      %782 = vmatpush.msra.mxu0 %v328
      %783 = vmatpush.msra.mxu0 %v327
      %784 = vmatpush.msra.mxu0 %v326
      %785 = vmatpush.msra.mxu0 %v325
      %786 = vmatpush.msra.mxu0 %v324
      %787 = vmatpush.msra.mxu0 %v323
      %788 = vmatpush.msra.mxu0 %v322
      %789 = vmatmul.f32.gmra.mxu0 %v743
      %v790 = vpop.f32.mrf.mxu0
      %v791 = vadd.f32 %v771, %v790
      %792 = vdwg.mxu0
      %v793 = vadd.f32 %v752, %v791
      %vm794 = vcmask 31744
      %795 = vst.msk [vmem:[%s290] sm:$0xff] %vm794, %v793
      %v796 = vld [vmem:[%s298] sm:$0xff]
      %797 = vmatpush.msra.mxu0 %v321
      %798 = vmatpush.msra.mxu0 %v320
      %799 = vmatpush.msra.mxu0 %v319
      %800 = vmatpush.msra.mxu0 %v318
      %801 = vmatpush.msra.mxu0 %v317
      %802 = vmatpush.msra.mxu0 %v316
      %803 = vmatpush.msra.mxu0 %v315
      %804 = vmatpush.msra.mxu0 %v314
      %805 = vmatpush.msra.mxu0 %v313
      %806 = vmatpush.msra.mxu0 %v312
      %807 = vmatpush.msra.mxu0 %v311
      %808 = vmatpush.msra.mxu0 %v310
      %809 = vmatpush.msra.mxu0 %v309
      %810 = vmatpush.msra.mxu0 %v308
      %811 = vmatpush.msra.mxu0 %v307
      %812 = vmatpush.msra.mxu0 %v306
      %813 = vmatmul.f32.gmra.mxu0 %v750
      %v814 = vpop.f32.mrf.mxu0
      %v815 = vadd.f32 0.0, %v814
      %816 = vdwg.mxu0
      %817 = vmatpush.msra.mxu0 %v337
      %818 = vmatpush.msra.mxu0 %v336
      %819 = vmatpush.msra.mxu0 %v335
      %820 = vmatpush.msra.mxu0 %v334
      %821 = vmatpush.msra.mxu0 %v333
      %822 = vmatpush.msra.mxu0 %v332
      %823 = vmatpush.msra.mxu0 %v331
      %824 = vmatpush.msra.mxu0 %v330
      %825 = vmatpush.msra.mxu0 %v329
      %826 = vmatpush.msra.mxu0 %v328
      %827 = vmatpush.msra.mxu0 %v327
      %828 = vmatpush.msra.mxu0 %v326
      %829 = vmatpush.msra.mxu0 %v325
      %830 = vmatpush.msra.mxu0 %v324
      %831 = vmatpush.msra.mxu0 %v323
      %832 = vmatpush.msra.mxu0 %v322
      %833 = vmatmul.f32.gmra.mxu0 %v751
      %v834 = vpop.f32.mrf.mxu0
      %v835 = vadd.f32 %v815, %v834
      %836 = vdwg.mxu0
      %v837 = vadd.f32 %v796, %v835
      %838 = vst.msk [vmem:[%s298] sm:$0xff] %vm794, %v837
      %p839 = scmp.lt.s32.totalorder %s20, 0
      %s840 = scalar_select %p839, %s20, 0
      %p841 = scmp.lt.s32.totalorder %s21, 1
      %s842 = scalar_select %p841, %s21, 1
      %s843 = smul.addr %s840, 2
      %s844 = sadd.s32 %s842, %s843
      %s845 = smul.addr %s844, 8
      %s846 = scalar_lea.vmem %s2, %s845
      %p847 = scmp.lt.s32.totalorder %s20, 0
      %s848 = scalar_select %p847, %s20, 0
      %p849 = scmp.lt.s32.totalorder %s21, 1
      %s850 = scalar_select %p849, %s21, 1
      %s851 = smul.addr %s848, 2
      %s852 = sadd.s32 %s850, %s851
      %s853 = smul.addr %s852, 8
      %s854 = scalar_lea.vmem %s3, %s853
      // Predicated region
      $region33: #{tpu_custom_call.1} parent=27 // pred_check
        %p855 = pneg %p118
      $region34: #{tpu_custom_call.1} parent=27 // pred_check_branch
        %857 = sbr.rel (%p855) target = $region36
      $region35: #{tpu_custom_call.1} parent=27 // pred_region
        _
      $region36: #{tpu_custom_call.1} parent=27 // pred_fallthru
        _
      // Predicated region
      $region37: #{tpu_custom_call.1} parent=27 // pred_check
        %p858 = pneg %p146
      $region38: #{tpu_custom_call.1} parent=27 // pred_check_branch
        %860 = sbr.rel (%p858) target = $region40
      $region39: #{tpu_custom_call.1} parent=27 // pred_region
        _
      $region40: #{tpu_custom_call.1} parent=27 // pred_fallthru
        _
    $region28: #{tpu_custom_call.1} parent=5 // pred_fallthru
      _
    %p861 = scmp.le.s32.totalorder 2, %s10
    // Predicated region
    $region41: #{tpu_custom_call.1} parent=5 // pred_check
      %p862 = pneg %p861
    $region42: #{tpu_custom_call.1} parent=5 // pred_check_branch
      %864 = sbr.rel (%p862) target = $region44
    $region43: #{tpu_custom_call.1} parent=5 // pred_region
      %s865 = ssub.s32 %s10, 2
      // Predicated region
      $region45: #{tpu_custom_call.1} parent=43 // pred_check
        %p866 = pneg %p124
      $region46: #{tpu_custom_call.1} parent=43 // pred_check_branch
        %868 = sbr.rel (%p866) target = $region48
      $region47: #{tpu_custom_call.1} parent=43 // pred_region
        %p869 = scmp.lt.s32.totalorder %s23, 0
        %s870 = scalar_select %p869, %s23, 0
        %p871 = scmp.lt.s32.totalorder %s24, 1
        %s872 = scalar_select %p871, %s24, 1
        %s873 = smul.addr %s870, 2
        %s874 = sadd.s32 %s872, %s873
        %s875 = smul.addr %s874, 8
        %s876 = scalar_lea.vmem %s2, %s875
      $region48: #{tpu_custom_call.1} parent=43 // pred_fallthru
        _
      // Predicated region
      $region49: #{tpu_custom_call.1} parent=43 // pred_check
        %p877 = pneg %p152
      $region50: #{tpu_custom_call.1} parent=43 // pred_check_branch
        %879 = sbr.rel (%p877) target = $region52
      $region51: #{tpu_custom_call.1} parent=43 // pred_region
        %p880 = scmp.lt.s32.totalorder %s23, 0
        %s881 = scalar_select %p880, %s23, 0
        %p882 = scmp.lt.s32.totalorder %s24, 1
        %s883 = scalar_select %p882, %s24, 1
        %s884 = smul.addr %s881, 2
        %s885 = sadd.s32 %s883, %s884
        %s886 = smul.addr %s885, 8
        %s887 = scalar_lea.vmem %s3, %s886
      $region52: #{tpu_custom_call.1} parent=43 // pred_fallthru
        _
    $region44: #{tpu_custom_call.1} parent=5 // pred_fallthru
      _
  $region6: #{tpu_custom_call.1} parent=0 // loop_footer
    %s14 = sadd.s32 1, %s10
  $region7: #{tpu_custom_call.1} parent=0 // loop_footer_branch
    %9 = sbr.rel target = $region3
  $region8: #{tpu_custom_call.1} parent=0 // loop_exit
    _

</llo_original>
